<compile_context>
chip_gen: v7x
topology: tpu7x:2x2x1
jax: 0.10.0
libtpu: 0.0.40
codegen_flags: <defaults>
</compile_context>

<pallas_src>
import math

import jax
import jax.numpy as jnp
from jax.experimental import pallas as pl
from jax.experimental.pallas import tpu as pltpu


_INV_SQRT2 = 1.0 / math.sqrt(2.0)


def _gelu_exact(x):
    # Exact (erf-based) GELU, matching torch.nn.GELU() default.
    return 0.5 * x * (1.0 + jax.lax.erf(x * _INV_SQRT2))


def mlp_kernel(x_ref, w_fc_ref, b_fc_ref, w_proj_ref, b_proj_ref, o_ref):
    # x_ref:      (tm, D)   f32 activation row tile (constant across H axis)
    # w_fc_ref:   (D, tH)   bf16 W_fc column block
    # b_fc_ref:   (1, tH)   f32 bias slice
    # w_proj_ref: (tH, D)   bf16 W_proj row block
    # b_proj_ref: (1, D)    f32 bias
    # o_ref:      (tm, D)   f32 output tile; VMEM-resident across the H axis
    #                       and used directly as the accumulator.
    hb = pl.program_id(1)

    # Cast the activation tile to bf16 in-register (MXU input).
    x_bf = x_ref[...].astype(jnp.bfloat16)

    # First matmul on the MXU: bf16 inputs, f32 accumulation.
    h = jnp.dot(x_bf, w_fc_ref[...], preferred_element_type=jnp.float32)
    # Bias + exact erf-GELU in f32 (VPU/EUP path; matches torch).
    h = _gelu_exact(h + b_fc_ref[...])
    # Second matmul: this H block's partial contribution to y.
    y_part = jnp.dot(h.astype(jnp.bfloat16), w_proj_ref[...],
                     preferred_element_type=jnp.float32)

    @pl.when(hb == 0)
    def _():
        o_ref[...] = y_part

    @pl.when(hb > 0)
    def _():
        o_ref[...] += y_part

    @pl.when(hb == pl.num_programs(1) - 1)
    def _():
        # TODO(synk): Dropout is identity in eval / p=0.0; a training-mode
        # dropout would build its mask here with pltpu.prng_seed +
        # pltpu.prng_random_bits.
        o_ref[...] += b_proj_ref[...]


def _round_up(x, m):
    return (x + m - 1) // m * m


def _pick_h_tile(h_total, desired):
    """Largest multiple of 128 <= desired that divides H (else full H)."""
    if h_total <= desired:
        return h_total
    t = (desired // 128) * 128
    while t >= 128:
        if h_total % t == 0:
            return t
        t -= 128
    return h_total


def _tile_plan():
    """Per-generation (tm_target, th_target, vmem_budget_bytes, n_cores)."""
    kind = ""
    try:
        kind = jax.devices()[0].device_kind.lower()
    except Exception:
        pass
    if "v7" in kind:
        # 64 MiB VMEM / TC, 2 TCs, ~3.2 TB/s HBM: per-TC break-even tm ~320,
        # keep headroom well below the physical 64 MiB.
        return 512, 512, 48 * 2**20, 2
    if "v6" in kind:
        # 128 MiB VMEM, 918 TF/s bf16: need tm >~ 680 to hide weight DMA.
        return 1024, 1024, 104 * 2**20, 1
    # v5e / unknown: weak MXU (197 TF/s) -> tm=256 already balances weight DMA.
    return 256, 512, 64 * 2**20, 1


def _vmem_need(tm, th, d):
    """Approximate VMEM working set (double-buffered tiles + margin)."""
    x_t = tm * d * 4                       # f32 activation tile
    wfc_t = d * th * 2                     # bf16 W_fc block
    wpj_t = th * d * 2                     # bf16 W_proj block
    bfc_t = 8 * _round_up(th, 128) * 4     # padded (1, th) f32
    bpj_t = 8 * _round_up(d, 128) * 4      # padded (1, D) f32
    out_t = tm * d * 4                     # f32 output tile
    return 2 * (x_t + wfc_t + wpj_t + bfc_t + bpj_t + out_t) + 2 * 2**20


def mlp_forward(x, w_fc, b_fc, w_proj, b_proj):
    """x: (B, T, D) f32 -> (B, T, D) f32.

    Weights in x @ W layout (transposed vs. PyTorch):
      w_fc: (D, H), b_fc: (H,), w_proj: (H, D), b_proj: (D,).
    Pass w_fc / w_proj pre-cast to bf16 (once, at init) to avoid a per-call
    conversion pass over the weights.
    """
    B, T, D = x.shape
    H = w_fc.shape[1]
    M = B * T

    tm_target, th_target, vmem_cap, n_cores = _tile_plan()

    th = _pick_h_tile(H, th_target)
    # Big row tiles so streamed weights hide under the MXU; shrink for tiny M
    # (padded rows are pure waste).
    tm = min(tm_target, _round_up(M, 16))
    # Shrink tiles until the working set fits the per-generation VMEM budget.
    while _vmem_need(tm, th, D) > vmem_cap and th > 128:
        th = _pick_h_tile(H, th - 128)
    while _vmem_need(tm, th, D) > vmem_cap and tm > 64:
        tm = max(64, tm // 2)
    # v7x megacore: the "parallel" M axis shards row tiles across both
    # TensorCores; split a single oversized tile so neither core idles.
    if n_cores >= 2 and _round_up(M, tm) // tm < 2 and tm >= 512:
        tm //= 2

    Mp = _round_up(M, tm)
    x2d = x.reshape(M, D)          # stays f32; cast to bf16 inside the kernel
    if Mp != M:
        x2d = jnp.pad(x2d, ((0, Mp - M), (0, 0)))

    # Weights should already be bf16 (cast once at init); cast only as a
    # fallback so the MXU always sees bf16 inputs.
    w_fc_b = w_fc if w_fc.dtype == jnp.bfloat16 else w_fc.astype(jnp.bfloat16)
    w_proj_b = (w_proj if w_proj.dtype == jnp.bfloat16
                else w_proj.astype(jnp.bfloat16))
    b_fc2d = b_fc.reshape(1, H).astype(jnp.float32)
    b_proj2d = b_proj.reshape(1, D).astype(jnp.float32)

    grid_m, grid_h = Mp // tm, H // th

    cost = pl.CostEstimate(
        flops=4 * Mp * D * H,                       # two matmuls
        transcendentals=Mp * H,                     # erf inside GELU
        bytes_accessed=(Mp * D * 4                  # x read (f32)
                        + Mp * D * 4                # y write (f32)
                        + grid_m * (2 * D * H * 2)  # W_fc+W_proj re-streamed / M tile
                        + grid_m * (H + D) * 4),    # biases re-streamed
    )

    out2d = pl.pallas_call(
        mlp_kernel,
        out_shape=jax.ShapeDtypeStruct((Mp, D), jnp.float32),
        grid_spec=pltpu.PrefetchScalarGridSpec(
            num_scalar_prefetch=0,
            grid=(grid_m, grid_h),
            in_specs=[
                pl.BlockSpec((tm, D), lambda i, h: (i, 0)),   # x row tile
                pl.BlockSpec((D, th), lambda i, h: (0, h)),   # W_fc H-block
                pl.BlockSpec((1, th), lambda i, h: (0, h)),   # b_fc slice
                pl.BlockSpec((th, D), lambda i, h: (h, 0)),   # W_proj H-block
                pl.BlockSpec((1, D), lambda i, h: (0, 0)),    # b_proj
            ],
            out_specs=pl.BlockSpec((tm, D), lambda i, h: (i, 0)),
        ),
        compiler_params=pltpu.CompilerParams(
            dimension_semantics=("parallel", "arbitrary"),
            vmem_limit_bytes=int(min(vmem_cap,
                                     max(32 * 2**20, _vmem_need(tm, th, D)))),
        ),
        cost_estimate=cost,
    )(x2d, w_fc_b, b_fc2d, w_proj_b, b_proj2d)

    return out2d[:M].reshape(B, T, D)


def reference_mlp(x, w_fc, b_fc, w_proj, b_proj):
    h = jnp.einsum("btd,dh->bth", x, w_fc) + b_fc
    h = _gelu_exact(h)
    return jnp.einsum("bth,hd->btd", h, w_proj) + b_proj


if __name__ == "__main__":
    # Toy config: n_embd=32, exp_factor=1.0 -> hidden = 4*32 = 128, bias=True,
    # dropout=0.0 (eval); batch=2, seq=8.  Real GPT dims just scale the grid.
    B, T, D = 2, 8, 32
    H = 4 * D

    key = jax.random.PRNGKey(0)
    kx, k1, k2, k3, k4 = jax.random.split(key, 5)

    x = jax.random.normal(kx, (B, T, D), dtype=jnp.float32)
    lim_fc = 1.0 / math.sqrt(D)
    lim_pj = 1.0 / math.sqrt(H)
    # Deterministic init, roughly matching nn.Linear's uniform(-1/sqrt(fan_in), ..)
    w_fc = jax.random.uniform(k1, (D, H), jnp.float32, -lim_fc, lim_fc)
    b_fc = jax.random.uniform(k2, (H,), jnp.float32, -lim_fc, lim_fc)
    w_proj = jax.random.uniform(k3, (H, D), jnp.float32, -lim_pj, lim_pj)
    b_proj = jax.random.uniform(k4, (D,), jnp.float32, -lim_pj, lim_pj)

    # Pre-cast the weights to bf16 once, outside the per-forward path.
    w_fc_b = w_fc.astype(jnp.bfloat16)
    w_proj_b = w_proj.astype(jnp.bfloat16)

    out = mlp_forward(x, w_fc_b, b_fc, w_proj_b, b_proj)
    out = jax.block_until_ready(out)

    ref = reference_mlp(x, w_fc, b_fc, w_proj, b_proj)
    assert out.shape == (B, T, D)
    # bf16 MXU inputs with f32 accumulation -> compare with loosened tolerance.
    assert jnp.allclose(out, ref, atol=2e-2, rtol=2e-2), "mismatch vs reference"

    print("KERNEL_OK")
</pallas_src>

<mosaic_0001>
module attributes {stable_mosaic.version = 11 : i64} {
  func.func @mlp_kernel(%arg0: i32, %arg1: i32, %arg2: memref<16x32xf32, #tpu.memory_space<vmem>>, %arg3: memref<32x128xbf16, #tpu.memory_space<vmem>>, %arg4: memref<1x128xf32, #tpu.memory_space<vmem>>, %arg5: memref<128x32xbf16, #tpu.memory_space<vmem>>, %arg6: memref<1x32xf32, #tpu.memory_space<vmem>>, %arg7: memref<16x32xf32, #tpu.memory_space<vmem>>) attributes {dimension_semantics = [#tpu.dimension_semantics<parallel>, #tpu.dimension_semantics<arbitrary>], iteration_bounds = array<i64: 1, 1>, scalar_prefetch = 0 : i64, scratch_operands = 0 : i64, tpu.core_type = #tpu.core_type<tc>, window_params = [{transform_indices = @transform_0, window_bounds = array<i64: 16, 32>}, {transform_indices = @transform_1, window_bounds = array<i64: 32, 128>}, {transform_indices = @transform_2, window_bounds = array<i64: 1, 128>}, {transform_indices = @transform_3, window_bounds = array<i64: 128, 32>}, {pipeline_mode = #tpu.pipeline_mode<synchronous>, transform_indices = @transform_4, window_bounds = array<i64: 1, 32>}, {transform_indices = @transform_5, window_bounds = array<i64: 16, 32>}]} {
    %c0 = arith.constant 0 : index
    %c0_0 = arith.constant 0 : index
    %0 = vector.load %arg2[%c0, %c0_0] : memref<16x32xf32, #tpu.memory_space<vmem>>, vector<16x32xf32>
    %1 = arith.truncf %0 : vector<16x32xf32> to vector<16x32xbf16>
    %c0_1 = arith.constant 0 : index
    %c0_2 = arith.constant 0 : index
    %2 = vector.load %arg3[%c0_1, %c0_2] : memref<32x128xbf16, #tpu.memory_space<vmem>>, vector<32x128xbf16>
    %cst = arith.constant dense<0.000000e+00> : vector<16x128xf32>
    %3 = tpu.matmul %1, %2, %cst {dimension_numbers = #tpu.dot_dimension_numbers<[1], [0], [0], [1], [0, 0, 1, 1], [], []>} : vector<16x32xbf16>, vector<32x128xbf16>, vector<16x128xf32> -> vector<16x128xf32>
    %c0_3 = arith.constant 0 : index
    %c0_4 = arith.constant 0 : index
    %4 = vector.load %arg4[%c0_3, %c0_4] : memref<1x128xf32, #tpu.memory_space<vmem>>, vector<1x128xf32>
    %5 = vector.broadcast %4 : vector<1x128xf32> to vector<16x128xf32>
    %6 = arith.addf %3, %5 : vector<16x128xf32>
    %cst_5 = arith.constant 5.000000e-01 : f32
    %7 = vector.broadcast %cst_5 : f32 to vector<16x128xf32>
    %8 = arith.mulf %7, %6 : vector<16x128xf32>
    %cst_6 = arith.constant 0.707106769 : f32
    %9 = vector.broadcast %cst_6 : f32 to vector<16x128xf32>
    %10 = arith.mulf %6, %9 : vector<16x128xf32>
    %11 = math.erf %10 : vector<16x128xf32>
    %cst_7 = arith.constant 1.000000e+00 : f32
    %12 = vector.broadcast %cst_7 : f32 to vector<16x128xf32>
    %13 = arith.addf %12, %11 : vector<16x128xf32>
    %14 = arith.mulf %8, %13 : vector<16x128xf32>
    %15 = arith.truncf %14 : vector<16x128xf32> to vector<16x128xbf16>
    %c0_8 = arith.constant 0 : index
    %c0_9 = arith.constant 0 : index
    %16 = vector.load %arg5[%c0_8, %c0_9] : memref<128x32xbf16, #tpu.memory_space<vmem>>, vector<128x32xbf16>
    %cst_10 = arith.constant dense<0.000000e+00> : vector<16x32xf32>
    %17 = tpu.matmul %15, %16, %cst_10 {dimension_numbers = #tpu.dot_dimension_numbers<[1], [0], [0], [1], [0, 0, 1, 1], [], []>} : vector<16x128xbf16>, vector<128x32xbf16>, vector<16x32xf32> -> vector<16x32xf32>
    %c0_i32 = arith.constant 0 : i32
    %18 = arith.cmpi eq, %arg1, %c0_i32 : i32
    %19 = arith.extui %18 : i1 to i32
    %c0_i32_11 = arith.constant 0 : i32
    %20 = arith.cmpi ne, %19, %c0_i32_11 : i32
    scf.if %20 {
      %c0_16 = arith.constant 0 : index
      %c0_17 = arith.constant 0 : index
      %27 = vector.load %arg7[%c0_16, %c0_17] : memref<16x32xf32, #tpu.memory_space<vmem>>, vector<16x32xf32>
      tpu.vector_store %arg7[%c0_16, %c0_17], %17 {strides = array<i32>} : memref<16x32xf32, #tpu.memory_space<vmem>>, vector<16x32xf32>,
    } else {
    }
    %c0_i32_12 = arith.constant 0 : i32
    %21 = arith.cmpi sgt, %arg1, %c0_i32_12 : i32
    %22 = arith.extui %21 : i1 to i32
    %c0_i32_13 = arith.constant 0 : i32
    %23 = arith.cmpi ne, %22, %c0_i32_13 : i32
    scf.if %23 {
      %c0_16 = arith.constant 0 : index
      %c0_17 = arith.constant 0 : index
      %27 = vector.load %arg7[%c0_16, %c0_17] : memref<16x32xf32, #tpu.memory_space<vmem>>, vector<16x32xf32>
      %28 = arith.addf %27, %17 : vector<16x32xf32>
      %c0_18 = arith.constant 0 : index
      %c0_19 = arith.constant 0 : index
      %29 = vector.load %arg7[%c0_18, %c0_19] : memref<16x32xf32, #tpu.memory_space<vmem>>, vector<16x32xf32>
      tpu.vector_store %arg7[%c0_18, %c0_19], %28 {strides = array<i32>} : memref<16x32xf32, #tpu.memory_space<vmem>>, vector<16x32xf32>,
    } else {
    }
    %c0_i32_14 = arith.constant 0 : i32
    %24 = arith.cmpi eq, %arg1, %c0_i32_14 : i32
    %25 = arith.extui %24 : i1 to i32
    %c0_i32_15 = arith.constant 0 : i32
    %26 = arith.cmpi ne, %25, %c0_i32_15 : i32
    scf.if %26 {
      %c0_16 = arith.constant 0 : index
      %c0_17 = arith.constant 0 : index
      %27 = vector.load %arg7[%c0_16, %c0_17] : memref<16x32xf32, #tpu.memory_space<vmem>>, vector<16x32xf32>
      %c0_18 = arith.constant 0 : index
      %c0_19 = arith.constant 0 : index
      %28 = vector.load %arg6[%c0_18, %c0_19] : memref<1x32xf32, #tpu.memory_space<vmem>>, vector<1x32xf32>
      %29 = vector.broadcast %28 : vector<1x32xf32> to vector<16x32xf32>
      %30 = arith.addf %27, %29 : vector<16x32xf32>
      %c0_20 = arith.constant 0 : index
      %c0_21 = arith.constant 0 : index
      %31 = vector.load %arg7[%c0_20, %c0_21] : memref<16x32xf32, #tpu.memory_space<vmem>>, vector<16x32xf32>
      tpu.vector_store %arg7[%c0_20, %c0_21], %30 {strides = array<i32>} : memref<16x32xf32, #tpu.memory_space<vmem>>, vector<16x32xf32>,
    } else {
    }
    return
  }
  func.func @transform_0(%arg0: i32, %arg1: i32) -> (i32, i32) {
    %c0_i32 = arith.constant 0 : i32
    %c0_i32_0 = arith.constant 0 : i32
    return %arg0, %c0_i32 : i32, i32
  }
  func.func @transform_1(%arg0: i32, %arg1: i32) -> (i32, i32) {
    %c0_i32 = arith.constant 0 : i32
    %c0_i32_0 = arith.constant 0 : i32
    return %c0_i32, %arg1 : i32, i32
  }
  func.func @transform_2(%arg0: i32, %arg1: i32) -> (i32, i32) {
    %c0_i32 = arith.constant 0 : i32
    %c0_i32_0 = arith.constant 0 : i32
    return %c0_i32, %arg1 : i32, i32
  }
  func.func @transform_3(%arg0: i32, %arg1: i32) -> (i32, i32) {
    %c0_i32 = arith.constant 0 : i32
    %c0_i32_0 = arith.constant 0 : i32
    return %arg1, %c0_i32 : i32, i32
  }
  func.func @transform_4(%arg0: i32, %arg1: i32) -> (i32, i32) {
    %c0_i32 = arith.constant 0 : i32
    %c0_i32_0 = arith.constant 0 : i32
    %c0_i32_1 = arith.constant 0 : i32
    return %c0_i32, %c0_i32_0 : i32, i32
  }
  func.func @transform_5(%arg0: i32, %arg1: i32) -> (i32, i32) {
    %c0_i32 = arith.constant 0 : i32
    %c0_i32_0 = arith.constant 0 : i32
    return %arg0, %c0_i32 : i32, i32
  }
}

</mosaic_0001>

<llo_original>
// kernel: tpu_custom_call.1
$region0: #{tpu_custom_call.1}
  #allocation0 [shape = 'u32[]', space=smem, size = 0x4, offset = 0x4, fixed_abs, tag = 'smem constant byte address 0x4 - core index']
  #allocation1 [shape = 'u32[144,128]{1,0:T(1,128)}', space=vmem, size = 0x12000, scoped, tag = 'internal scratch']
  %s0 = inlined_call_operand.vmem [shape: f32[16,32], index: 0, kind: input, shape index: {}]
  %s1 = inlined_call_operand.vmem [shape: bf16[32,128], index: 1, kind: input, shape index: {}]
  %s2 = inlined_call_operand.vmem [shape: f32[1,128], index: 2, kind: input, shape index: {}]
  %s3 = inlined_call_operand.vmem [shape: bf16[128,32], index: 3, kind: input, shape index: {}]
  %s4 = inlined_call_operand.vmem [shape: f32[1,32], index: 4, kind: input, shape index: {}]
  %s5 = inlined_call_operand.hbm [shape: f32[16,32], index: 5, kind: output, shape index: {}]
  %s6 = sld [smem:[#allocation0]]
  $region42: #{tpu_custom_call.1} parent=0
    _
  %s8 = ssub.s32 1, %s6
  %s9 = scalar_select 0, %s8, %s6
  $region1: #{tpu_custom_call.1} parent=0
    #allocation2 [shape = 'u8[8192]{0}', space=vmem, size = 0x2000, scoped, tag = 'output window, operand 0, single buffered']
    #allocation3 [shape = 's32[1]{0}', space=sflag, size = 0x4, scoped, tag = 'scoped memory for tpu_custom_call.1']
    %10 = vsyncpa [#allocation3], 0
    // Predicated region
    $region2: #{tpu_custom_call.1} parent=1 // pred_check
      _
    $region3: #{tpu_custom_call.1} parent=1 // pred_check_branch
      %12 = sbr.rel (0) target = $region5
    $region4: #{tpu_custom_call.1} parent=1 // pred_region
      _
    $region5: #{tpu_custom_call.1} parent=1 // pred_fallthru
      _
    // Predicated region
    $region6: #{tpu_custom_call.1} parent=1 // pred_check
      _
    $region7: #{tpu_custom_call.1} parent=1 // pred_check_branch
      %14 = sbr.rel (0) target = $region9
    $region8: #{tpu_custom_call.1} parent=1 // pred_region
      _
    $region9: #{tpu_custom_call.1} parent=1 // pred_fallthru
      _
    // Predicated region
    $region10: #{tpu_custom_call.1} parent=1 // pred_check
      _
    $region11: #{tpu_custom_call.1} parent=1 // pred_check_branch
      %16 = sbr.rel (0) target = $region13
    $region12: #{tpu_custom_call.1} parent=1 // pred_region
      _
    $region13: #{tpu_custom_call.1} parent=1 // pred_fallthru
      _
    // Predicated region
    $region14: #{tpu_custom_call.1} parent=1 // pred_check
      _
    $region15: #{tpu_custom_call.1} parent=1 // pred_check_branch
      %18 = sbr.rel (0) target = $region17
    $region16: #{tpu_custom_call.1} parent=1 // pred_region
      _
    $region17: #{tpu_custom_call.1} parent=1 // pred_fallthru
      _
    // Predicated region
    $region18: #{tpu_custom_call.1} parent=1 // pred_check
      _
    $region19: #{tpu_custom_call.1} parent=1 // pred_check_branch
      %20 = sbr.rel (0) target = $region21
    $region20: #{tpu_custom_call.1} parent=1 // pred_region
      _
    $region21: #{tpu_custom_call.1} parent=1 // pred_fallthru
      _
    %v22 = vld [vmem:[%s0] sm:$0xff]
    %v23 = vld [vmem:[%s0 + $0x8] sm:$0xff]
    %v24 = vpack.c.bf16 %v23, %v22
    %v25 = vld [vmem:[%s1] sm:$0xf]
    %v26 = vld [vmem:[%s1 + $0x4] sm:$0xf]
    %v27 = vld [vmem:[%s1 + $0x8] sm:$0xf]
    %v28 = vld [vmem:[%s1 + $0xc] sm:$0xf]
    %v29 = vld [vmem:[%s2] sm:$0x1]
    %v31 = vlaneseq
    %v32 = vshrl.u32 %v31, 7
    %v33 = vsub.s32 0, %v32
    %v34 = vrot.slane %v29, %v33
    %v40 = vunpack.c.l.b16 %v25
    %v41 = vunpack.c.l.b16 %v26
    %v42 = vunpack.c.l.b16 %v27
    %v43 = vunpack.c.l.b16 %v28
    %v44 = vpack.c.b16 %v41, %v40
    %v45 = vpack.c.b16 %v43, %v42
    %vm48 = vcmask 261120
    %v50 = vsel %vm48, %v24, 0
    %52 = vmatprep.subr.bf16.mxu0 0
    %53 = vmatpush1.bf16.msra.mxu0 %v44
    %54 = vmatprep.subr.bf16.mxu0 0
    %55 = vmatpush1.bf16.msra.mxu0 %v45
    %56 = vmatprep.subr.bf16.mxu0 0
    %57 = vmatpush1.bf16.msra.mxu0 0
    %58 = vmatprep.subr.bf16.mxu0 0
    %59 = vmatpush1.bf16.msra.mxu0 0
    %60 = vmatprep.subr.bf16.mxu0 0
    %61 = vmatpush1.bf16.msra.mxu0 0
    %62 = vmatprep.subr.bf16.mxu0 0
    %63 = vmatpush1.bf16.msra.mxu0 0
    %64 = vmatprep.subr.bf16.mxu0 0
    %65 = vmatpush1.bf16.msra.mxu0 0
    %66 = vmatprep.subr.bf16.mxu0 0
    %67 = vmatpush1.bf16.msra.mxu0 0
    %68 = vmatprep.subr.bf16.mxu0 0
    %69 = vmatpush1.bf16.msra.mxu0 0
    %70 = vmatprep.subr.bf16.mxu0 0
    %71 = vmatpush1.bf16.msra.mxu0 0
    %72 = vmatprep.subr.bf16.mxu0 0
    %73 = vmatpush1.bf16.msra.mxu0 0
    %74 = vmatprep.subr.bf16.mxu0 0
    %75 = vmatpush1.bf16.msra.mxu0 0
    %76 = vmatprep.subr.bf16.mxu0 0
    %77 = vmatpush1.bf16.msra.mxu0 0
    %78 = vmatprep.subr.bf16.mxu0 0
    %79 = vmatpush1.bf16.msra.mxu0 0
    %80 = vmatprep.subr.bf16.mxu0 0
    %81 = vmatpush1.bf16.msra.mxu0 0
    %82 = vmatprep.subr.bf16.mxu0 0
    %83 = vmatpush1.bf16.msra.mxu0 0
    %84 = vmatprep.mubr.bf16.mxu0 0
    %85 = vmatmul.mubr.bf16.gmra.mrb[0].mxu0 %v50
    %v86 = vpop.f32.mrb[0].mxu0
    %v87 = vadd.f32 %v34, %v86
    %v88 = vpop.f32.mrb[0].mxu0
    %v89 = vpop.f32.mrb[0].mxu0
    %v90 = vadd.f32 %v34, %v89
    %v91 = vpop.f32.mrb[0].mxu0
    %92 = vdwg.mxu0
    %v93 = vmul.f32 %v87, 0.5
    %v94 = vmul.f32 %v90, 0.5
    %v95 = vmul.f32 %v87, 0.70710677
    %v96 = vmul.f32 %v90, 0.70710677
    %v97 = verf.f32.pop %v95
    %v98 = verf.f32.pop %v96
    %v99 = vadd.f32 %v97, 1.0
    %v100 = vadd.f32 %v98, 1.0
    %v101 = vmul.f32 %v93, %v99
    %v102 = vmul.f32 %v94, %v100
    %v103 = vpack.c.bf16 %v102, %v101
    %v104 = vld [vmem:[%s3] sm:$0xf]
    %v105 = vld [vmem:[%s3 + $0x4] sm:$0xf]
    %v106 = vld [vmem:[%s3 + $0x8] sm:$0xf]
    %v107 = vld [vmem:[%s3 + $0xc] sm:$0xf]
    %v108 = vld [vmem:[%s3 + $0x10] sm:$0xf]
    %v109 = vld [vmem:[%s3 + $0x14] sm:$0xf]
    %v110 = vld [vmem:[%s3 + $0x18] sm:$0xf]
    %v111 = vld [vmem:[%s3 + $0x1c] sm:$0xf]
    %v112 = vld [vmem:[%s3 + $0x20] sm:$0xf]
    %v113 = vld [vmem:[%s3 + $0x24] sm:$0xf]
    %v114 = vld [vmem:[%s3 + $0x28] sm:$0xf]
    %v115 = vld [vmem:[%s3 + $0x2c] sm:$0xf]
    %v116 = vld [vmem:[%s3 + $0x30] sm:$0xf]
    %v117 = vld [vmem:[%s3 + $0x34] sm:$0xf]
    %v118 = vld [vmem:[%s3 + $0x38] sm:$0xf]
    %v119 = vld [vmem:[%s3 + $0x3c] sm:$0xf]
    %v136 = vunpack.c.l.b16 %v104
    %v137 = vunpack.c.l.b16 %v105
    %v138 = vunpack.c.l.b16 %v106
    %v139 = vunpack.c.l.b16 %v107
    %v140 = vunpack.c.l.b16 %v108
    %v141 = vunpack.c.l.b16 %v109
    %v142 = vunpack.c.l.b16 %v110
    %v143 = vunpack.c.l.b16 %v111
    %v144 = vunpack.c.l.b16 %v112
    %v145 = vunpack.c.l.b16 %v113
    %v146 = vunpack.c.l.b16 %v114
    %v147 = vunpack.c.l.b16 %v115
    %v148 = vunpack.c.l.b16 %v116
    %v149 = vunpack.c.l.b16 %v117
    %v150 = vunpack.c.l.b16 %v118
    %v151 = vunpack.c.l.b16 %v119
    %v152 = vpack.c.b16 %v137, %v136
    %v153 = vpack.c.b16 %v139, %v138
    %v154 = vpack.c.b16 %v141, %v140
    %v155 = vpack.c.b16 %v143, %v142
    %v156 = vpack.c.b16 %v145, %v144
    %v157 = vpack.c.b16 %v147, %v146
    %v158 = vpack.c.b16 %v149, %v148
    %v159 = vpack.c.b16 %v151, %v150
    %168 = vmatprep.subr.bf16.mxu0 0
    %169 = vmatpush1.bf16.msra.mxu0 %v152
    %170 = vmatprep.subr.bf16.mxu0 0
    %171 = vmatpush1.bf16.msra.mxu0 %v153
    %172 = vmatprep.subr.bf16.mxu0 0
    %173 = vmatpush1.bf16.msra.mxu0 %v154
    %174 = vmatprep.subr.bf16.mxu0 0
    %175 = vmatpush1.bf16.msra.mxu0 %v155
    %176 = vmatprep.subr.bf16.mxu0 0
    %177 = vmatpush1.bf16.msra.mxu0 %v156
    %178 = vmatprep.subr.bf16.mxu0 0
    %179 = vmatpush1.bf16.msra.mxu0 %v157
    %180 = vmatprep.subr.bf16.mxu0 0
    %181 = vmatpush1.bf16.msra.mxu0 %v158
    %182 = vmatprep.subr.bf16.mxu0 0
    %183 = vmatpush1.bf16.msra.mxu0 %v159
    %184 = vmatprep.subr.bf16.mxu0 0
    %185 = vmatpush1.bf16.msra.mxu0 0
    %186 = vmatprep.subr.bf16.mxu0 0
    %187 = vmatpush1.bf16.msra.mxu0 0
    %188 = vmatprep.subr.bf16.mxu0 0
    %189 = vmatpush1.bf16.msra.mxu0 0
    %190 = vmatprep.subr.bf16.mxu0 0
    %191 = vmatpush1.bf16.msra.mxu0 0
    %192 = vmatprep.subr.bf16.mxu0 0
    %193 = vmatpush1.bf16.msra.mxu0 0
    %194 = vmatprep.subr.bf16.mxu0 0
    %195 = vmatpush1.bf16.msra.mxu0 0
    %196 = vmatprep.subr.bf16.mxu0 0
    %197 = vmatpush1.bf16.msra.mxu0 0
    %198 = vmatprep.subr.bf16.mxu0 0
    %199 = vmatpush1.bf16.msra.mxu0 0
    %200 = vmatprep.mubr.bf16.mxu0 0
    %201 = vmatmul.mubr.bf16.gmra.mrb[0].mxu0 %v103
    %v202 = vpop.f32.mrb[0].mxu0
    %v203 = vadd.f32 0.0, %v202
    %v204 = vpop.f32.mrb[0].mxu0
    %v205 = vpop.f32.mrb[0].mxu0
    %v206 = vadd.f32 0.0, %v205
    %v207 = vpop.f32.mrb[0].mxu0
    %208 = vdwg.mxu0
    %p209 = scmp.eq.s32.totalorder 0, 0
    // Predicated region
    $region22: #{tpu_custom_call.1} parent=1 // pred_check
      %p210 = pneg %p209
    $region23: #{tpu_custom_call.1} parent=1 // pred_check_branch
      %212 = sbr.rel (%p210) target = $region25
    $region24: #{tpu_custom_call.1} parent=1 // pred_region
      %213 = vst.msk [vmem:[#allocation2] sm:$0xff] %vm48, %v203
      %214 = vst.msk [vmem:[#allocation2 + $0x8] sm:$0xff] %vm48, %v206
    $region25: #{tpu_custom_call.1} parent=1 // pred_fallthru
      _
    %p215 = scmp.gt.s32.totalorder 0, 0
    // Predicated region
    $region26: #{tpu_custom_call.1} parent=1 // pred_check
      %p216 = pneg %p215
    $region27: #{tpu_custom_call.1} parent=1 // pred_check_branch
      %218 = sbr.rel (%p216) target = $region29
    $region28: #{tpu_custom_call.1} parent=1 // pred_region
      %v219 = vld [vmem:[#allocation2] sm:$0xff]
      %v220 = vld [vmem:[#allocation2 + $0x8] sm:$0xff]
      %v221 = vadd.f32 %v219, %v203
      %v222 = vadd.f32 %v220, %v206
      %223 = vst.msk [vmem:[#allocation2] sm:$0xff] %vm48, %v221
      %224 = vst.msk [vmem:[#allocation2 + $0x8] sm:$0xff] %vm48, %v222
    $region29: #{tpu_custom_call.1} parent=1 // pred_fallthru
      _
    // Predicated region
    $region30: #{tpu_custom_call.1} parent=1 // pred_check
      %p225 = pneg %p209
    $region31: #{tpu_custom_call.1} parent=1 // pred_check_branch
      %227 = sbr.rel (%p225) target = $region33
    $region32: #{tpu_custom_call.1} parent=1 // pred_region
      %v228 = vld [vmem:[#allocation2] sm:$0xff]
      %v229 = vld [vmem:[#allocation2 + $0x8] sm:$0xff]
      %v230 = vld [vmem:[%s4] sm:$0x1]
      %v232 = vlaneseq
      %v233 = vshrl.u32 %v232, 7
      %v234 = vsub.s32 0, %v233
      %v235 = vrot.slane %v230, %v234
      %v237 = vadd.f32 %v228, %v235
      %v238 = vadd.f32 %v229, %v235
      %239 = vst.msk [vmem:[#allocation2] sm:$0xff] %vm48, %v237
      %240 = vst.msk [vmem:[#allocation2 + $0x8] sm:$0xff] %vm48, %v238
    $region33: #{tpu_custom_call.1} parent=1 // pred_fallthru
      _
    // Predicated region
    $region34: #{tpu_custom_call.1} parent=1 // pred_check
      _
    $region35: #{tpu_custom_call.1} parent=1 // pred_check_branch
      %242 = sbr.rel (0) target = $region37
    $region36: #{tpu_custom_call.1} parent=1 // pred_region
      %s244 = ssub.s32 256, 256
      %245 = vsyncadd [#allocation3], %s244
      %s246 = sshll.u32 [#allocation2], 4
      %s247 = int_to_ptr.vmem [resolvable:$true] %s246
      %252 = dma.vmem_to_hbm [thread:$0]  %s247, 256, %s5, [#allocation3], 128, 128, 8
    $region37: #{tpu_custom_call.1} parent=1 // pred_fallthru
      _
    // Predicated region
    $region38: #{tpu_custom_call.1} parent=1 // pred_check
      _
    $region39: #{tpu_custom_call.1} parent=1 // pred_check_branch
      %254 = sbr.rel (0) target = $region41
    $region40: #{tpu_custom_call.1} parent=1 // pred_region
      %255 = dma.done [#allocation3], 256
    $region41: #{tpu_custom_call.1} parent=1 // pred_fallthru
      _
    %256 = vsyncpa [#allocation3], 1

</llo_original>
